<compile_context>
chip_gen: v5e
topology: v5e:2x2
jax: 0.10.0
libtpu: 0.0.40
codegen_flags: <defaults>
</compile_context>

<pallas_src>
import jax
import jax.numpy as jnp
from jax.experimental import pallas as pl
from jax.experimental.pallas import tpu as pltpu


def relu_matmul_kernel(w_ref, x_ref, o_ref):
    """out = W @ relu(x), channel-major.

    w_ref: (C_out, C_in)  bf16  (pre-laid-out weight)
    x_ref: (C_in, H*W)    f32   (free reshape of the NCHW activation, N == 1)
    o_ref: (C_out, H*W)   f32
    """
    # ReLU in f32 (exact), single round to bf16 for the MXU; f32 accumulation.
    x = jnp.maximum(x_ref[...], 0.0).astype(jnp.bfloat16)
    o_ref[...] = jnp.dot(
        w_ref[...], x, preferred_element_type=jnp.float32
    ).astype(o_ref.dtype)


def bn_relu_matmul_kernel(w_ref, x_ref, scale_ref, shift_ref, o_ref):
    """out = W @ relu(x * scale + shift), channel-major (BN folded in).

    scale_ref/shift_ref: (C_in, 1) f32, broadcast along the lane (H*W) axis.
    """
    x = x_ref[...] * scale_ref[...] + shift_ref[...]
    x = jnp.maximum(x, 0.0).astype(jnp.bfloat16)
    o_ref[...] = jnp.dot(
        w_ref[...], x, preferred_element_type=jnp.float32
    ).astype(o_ref.dtype)


def prepare_weight(w_oi11: jax.Array) -> jax.Array:
    """One-time (init-time) weight transform: (C_out, C_in, 1, 1) f32 -> (C_out, C_in) bf16.

    Free reshape + single cast, hoisted out of the per-forward path.
    """
    C_out, C_in = w_oi11.shape[0], w_oi11.shape[1]
    return w_oi11.reshape(C_out, C_in).astype(jnp.bfloat16)


def _cost(C_in: int, C_out: int, M: int, extra_bytes: int = 0) -> pl.CostEstimate:
    return pl.CostEstimate(
        flops=2 * M * C_in * C_out,
        transcendentals=0,
        bytes_accessed=(C_in * M * 4          # x, f32
                        + C_out * C_in * 2    # w, bf16
                        + C_out * M * 4       # out, f32
                        + extra_bytes),
    )


@jax.jit
def relu_conv2d_1x1(x_nchw: jax.Array, w_mat: jax.Array) -> jax.Array:
    """ReLU followed by 1x1 conv (stride 1, no bias) — matches the reference module.

    x_nchw: (1, C_in, H, W) float32
    w_mat:  (C_out, C_in)   bfloat16 (from prepare_weight)
    returns (1, C_out, H, W) float32
    """
    N, C_in, H, W = x_nchw.shape
    C_out = w_mat.shape[0]
    assert N == 1, "channel-major formulation assumes N == 1 (as in the module)"
    M = H * W  # 49

    # Channel-major view: (1, C_in, H, W) -> (C_in, H*W) is a free reshape.
    x_mat = x_nchw.reshape(C_in, M)

    out_mat = pl.pallas_call(
        relu_matmul_kernel,
        out_shape=jax.ShapeDtypeStruct((C_out, M), jnp.float32),
        grid_spec=pltpu.PrefetchScalarGridSpec(
            num_scalar_prefetch=0,
            grid=(1,),
            in_specs=[
                pl.BlockSpec((C_out, C_in), lambda i: (0, 0)),
                pl.BlockSpec((C_in, M), lambda i: (0, 0)),
            ],
            out_specs=pl.BlockSpec((C_out, M), lambda i: (0, 0)),
        ),
        compiler_params=pltpu.CompilerParams(
            dimension_semantics=("arbitrary",)
        ),
        cost_estimate=_cost(C_in, C_out, M),
    )(w_mat, x_mat)

    # (C_out, H*W) -> (1, C_out, H, W): free reshape, no transpose.
    return out_mat.reshape(N, C_out, H, W)


@jax.jit
def bn_relu_conv2d_1x1(x_nchw: jax.Array, w_mat: jax.Array,
                       scale: jax.Array, shift: jax.Array) -> jax.Array:
    """Fused BN(affine) + ReLU + 1x1 conv — the model-integration path.

    scale/shift: (C_in,) or (C_in, 1) float32, folded from BN's
    gamma/(sqrt(var+eps)) and beta - mean*gamma/sqrt(var+eps).
    """
    N, C_in, H, W = x_nchw.shape
    C_out = w_mat.shape[0]
    assert N == 1, "channel-major formulation assumes N == 1 (as in the module)"
    M = H * W

    x_mat = x_nchw.reshape(C_in, M)
    scale2d = scale.reshape(C_in, 1).astype(jnp.float32)
    shift2d = shift.reshape(C_in, 1).astype(jnp.float32)

    out_mat = pl.pallas_call(
        bn_relu_matmul_kernel,
        out_shape=jax.ShapeDtypeStruct((C_out, M), jnp.float32),
        grid_spec=pltpu.PrefetchScalarGridSpec(
            num_scalar_prefetch=0,
            grid=(1,),
            in_specs=[
                pl.BlockSpec((C_out, C_in), lambda i: (0, 0)),
                pl.BlockSpec((C_in, M), lambda i: (0, 0)),
                pl.BlockSpec((C_in, 1), lambda i: (0, 0)),
                pl.BlockSpec((C_in, 1), lambda i: (0, 0)),
            ],
            out_specs=pl.BlockSpec((C_out, M), lambda i: (0, 0)),
        ),
        compiler_params=pltpu.CompilerParams(
            dimension_semantics=("arbitrary",)
        ),
        cost_estimate=_cost(C_in, C_out, M, extra_bytes=2 * C_in * 4),
    )(w_mat, x_mat, scale2d, shift2d)

    return out_mat.reshape(N, C_out, H, W)


if __name__ == "__main__":
    key = jax.random.PRNGKey(0)
    kx, kw, ks, kb = jax.random.split(key, 4)

    # Shapes implied by the module: input [1, 1184, 7, 7], conv 1184 -> 128.
    N, C_in, H, W = 1, 1184, 7, 7
    C_out = 128

    x = jax.random.normal(kx, (N, C_in, H, W), dtype=jnp.float32)
    # Deterministic synthetic weight (no checkpoint load).
    w = (jax.random.normal(kw, (C_out, C_in, 1, 1), dtype=jnp.float32)
         * (1.0 / jnp.sqrt(C_in)))

    # One-time weight prep (hoisted out of the per-call path).
    w_mat = jax.block_until_ready(prepare_weight(w))
    w2d = w.reshape(C_out, C_in)

    # ---- Path 1: plain ReLU + 1x1 conv (exact semantics of the PyTorch module).
    out = jax.block_until_ready(relu_conv2d_1x1(x, w_mat))
    ref = jnp.einsum("nchw,oc->nohw", jnp.maximum(x, 0.0), w2d)
    assert out.shape == (N, C_out, H, W), out.shape
    err = float(jnp.max(jnp.abs(out - ref)))
    assert jnp.allclose(out, ref, atol=2e-2, rtol=2e-2), err

    # ---- Path 2: fused BN(affine) + ReLU + 1x1 conv (model-integration path).
    scale = 0.5 + jax.random.uniform(ks, (C_in,), dtype=jnp.float32)        # ~U(0.5,1.5)
    shift = 0.1 * jax.random.normal(kb, (C_in,), dtype=jnp.float32)
    out_bn = jax.block_until_ready(bn_relu_conv2d_1x1(x, w_mat, scale, shift))
    x_bn = x * scale.reshape(1, C_in, 1, 1) + shift.reshape(1, C_in, 1, 1)
    ref_bn = jnp.einsum("nchw,oc->nohw", jnp.maximum(x_bn, 0.0), w2d)
    assert out_bn.shape == (N, C_out, H, W), out_bn.shape
    err_bn = float(jnp.max(jnp.abs(out_bn - ref_bn)))
    assert jnp.allclose(out_bn, ref_bn, atol=2e-2, rtol=2e-2), err_bn

    print("KERNEL_OK")
</pallas_src>

<mosaic_0001>
module attributes {stable_mosaic.version = 11 : i64} {
  func.func @relu_matmul_kernel(%arg0: i32, %arg1: memref<128x1184xbf16, #tpu.memory_space<vmem>>, %arg2: memref<1184x49xf32, #tpu.memory_space<vmem>>, %arg3: memref<128x49xf32, #tpu.memory_space<vmem>>) attributes {dimension_semantics = [#tpu.dimension_semantics<arbitrary>], iteration_bounds = array<i64: 1>, scalar_prefetch = 0 : i64, scratch_operands = 0 : i64, tpu.core_type = #tpu.core_type<tc>, window_params = [{pipeline_mode = #tpu.pipeline_mode<synchronous>, transform_indices = @transform_0, window_bounds = array<i64: 128, 1184>}, {pipeline_mode = #tpu.pipeline_mode<synchronous>, transform_indices = @transform_1, window_bounds = array<i64: 1184, 49>}, {pipeline_mode = #tpu.pipeline_mode<synchronous>, transform_indices = @transform_2, window_bounds = array<i64: 128, 49>}]} {
    %c0 = arith.constant 0 : index
    %c0_0 = arith.constant 0 : index
    %0 = vector.load %arg2[%c0, %c0_0] : memref<1184x49xf32, #tpu.memory_space<vmem>>, vector<1184x49xf32>
    %cst = arith.constant 0.000000e+00 : f32
    %1 = vector.broadcast %cst : f32 to vector<1184x49xf32>
    %2 = arith.maximumf %0, %1 : vector<1184x49xf32>
    %3 = arith.truncf %2 : vector<1184x49xf32> to vector<1184x49xbf16>
    %c0_1 = arith.constant 0 : index
    %c0_2 = arith.constant 0 : index
    %4 = vector.load %arg1[%c0_1, %c0_2] : memref<128x1184xbf16, #tpu.memory_space<vmem>>, vector<128x1184xbf16>
    %cst_3 = arith.constant dense<0.000000e+00> : vector<128x49xf32>
    %5 = tpu.matmul %4, %3, %cst_3 {dimension_numbers = #tpu.dot_dimension_numbers<[1], [0], [0], [1], [0, 0, 1, 1], [], []>} : vector<128x1184xbf16>, vector<1184x49xbf16>, vector<128x49xf32> -> vector<128x49xf32>
    %c0_4 = arith.constant 0 : index
    %c0_5 = arith.constant 0 : index
    %6 = vector.load %arg3[%c0_4, %c0_5] : memref<128x49xf32, #tpu.memory_space<vmem>>, vector<128x49xf32>
    tpu.vector_store %arg3[%c0_4, %c0_5], %5 {strides = array<i32>} : memref<128x49xf32, #tpu.memory_space<vmem>>, vector<128x49xf32>,
    return
  }
  func.func @transform_0(%arg0: i32) -> (i32, i32) {
    %c0_i32 = arith.constant 0 : i32
    %c0_i32_0 = arith.constant 0 : i32
    %c0_i32_1 = arith.constant 0 : i32
    return %c0_i32, %c0_i32_0 : i32, i32
  }
  func.func @transform_1(%arg0: i32) -> (i32, i32) {
    %c0_i32 = arith.constant 0 : i32
    %c0_i32_0 = arith.constant 0 : i32
    %c0_i32_1 = arith.constant 0 : i32
    return %c0_i32, %c0_i32_0 : i32, i32
  }
  func.func @transform_2(%arg0: i32) -> (i32, i32) {
    %c0_i32 = arith.constant 0 : i32
    %c0_i32_0 = arith.constant 0 : i32
    %c0_i32_1 = arith.constant 0 : i32
    return %c0_i32, %c0_i32_0 : i32, i32
  }
}

</mosaic_0001>

<llo_original>
// kernel: relu_conv2d_1x1.1
$region0: #{relu_conv2d_1x1.1}
  #allocation0 [shape = 'u32[]', space=smem, size = 0x4, offset = 0x4, fixed_abs, tag = 'smem constant byte address 0x4 - core index']
  #allocation1 [shape = 'u32[72,128]{1,0:T(1,128)}', space=vmem, size = 0x9000, scoped, tag = 'internal scratch']
  %s0 = inlined_call_operand.vmem [shape: bf16[128,1184], index: 0, kind: input, shape index: {}]
  %s1 = inlined_call_operand.vmem [shape: f32[1184,49], index: 1, kind: input, shape index: {}]
  %s2 = inlined_call_operand.vmem [shape: f32[128,49], index: 2, kind: output, shape index: {}]
  %s3 = sld [smem:[#allocation0]]
  $region18: #{relu_conv2d_1x1.1} parent=0
    _
  %s5 = ssub.s32 1, %s3
  %s6 = scalar_select 0, %s5, %s3
  // Predicated region
  $region2: #{relu_conv2d_1x1.1} parent=0 // pred_check
    _
  $region3: #{relu_conv2d_1x1.1} parent=0 // pred_check_branch
    %8 = sbr.rel (0) target = $region5
  $region4: #{relu_conv2d_1x1.1} parent=0 // pred_region
    _
  $region5: #{relu_conv2d_1x1.1} parent=0 // pred_fallthru
    _
  // Predicated region
  $region6: #{relu_conv2d_1x1.1} parent=0 // pred_check
    _
  $region7: #{relu_conv2d_1x1.1} parent=0 // pred_check_branch
    %10 = sbr.rel (0) target = $region9
  $region8: #{relu_conv2d_1x1.1} parent=0 // pred_region
    _
  $region9: #{relu_conv2d_1x1.1} parent=0 // pred_fallthru
    _
  %v12 = vld [vmem:[%s1] sm:$0xff]
  %v13 = vld [vmem:[%s1 + $0x8] sm:$0xff]
  %v14 = vld [vmem:[%s1 + $0x10] sm:$0xff]
  %v15 = vld [vmem:[%s1 + $0x18] sm:$0xff]
  %v16 = vld [vmem:[%s1 + $0x20] sm:$0xff]
  %v17 = vld [vmem:[%s1 + $0x28] sm:$0xff]
  %v18 = vld [vmem:[%s1 + $0x30] sm:$0xff]
  %v19 = vld [vmem:[%s1 + $0x38] sm:$0xff]
  %v20 = vld [vmem:[%s1 + $0x40] sm:$0xff]
  %v21 = vld [vmem:[%s1 + $0x48] sm:$0xff]
  %v22 = vld [vmem:[%s1 + $0x50] sm:$0xff]
  %v23 = vld [vmem:[%s1 + $0x58] sm:$0xff]
  %v24 = vld [vmem:[%s1 + $0x60] sm:$0xff]
  %v25 = vld [vmem:[%s1 + $0x68] sm:$0xff]
  %v26 = vld [vmem:[%s1 + $0x70] sm:$0xff]
  %v27 = vld [vmem:[%s1 + $0x78] sm:$0xff]
  %v28 = vld [vmem:[%s1 + $0x80] sm:$0xff]
  %v29 = vld [vmem:[%s1 + $0x88] sm:$0xff]
  %v30 = vld [vmem:[%s1 + $0x90] sm:$0xff]
  %v31 = vld [vmem:[%s1 + $0x98] sm:$0xff]
  %v32 = vld [vmem:[%s1 + $0xa0] sm:$0xff]
  %v33 = vld [vmem:[%s1 + $0xa8] sm:$0xff]
  %v34 = vld [vmem:[%s1 + $0xb0] sm:$0xff]
  %v35 = vld [vmem:[%s1 + $0xb8] sm:$0xff]
  %v36 = vld [vmem:[%s1 + $0xc0] sm:$0xff]
  %v37 = vld [vmem:[%s1 + $0xc8] sm:$0xff]
  %v38 = vld [vmem:[%s1 + $0xd0] sm:$0xff]
  %v39 = vld [vmem:[%s1 + $0xd8] sm:$0xff]
  %v40 = vld [vmem:[%s1 + $0xe0] sm:$0xff]
  %v41 = vld [vmem:[%s1 + $0xe8] sm:$0xff]
  %v42 = vld [vmem:[%s1 + $0xf0] sm:$0xff]
  %v43 = vld [vmem:[%s1 + $0xf8] sm:$0xff]
  %v44 = vld [vmem:[%s1 + $0x100] sm:$0xff]
  %v45 = vld [vmem:[%s1 + $0x108] sm:$0xff]
  %v46 = vld [vmem:[%s1 + $0x110] sm:$0xff]
  %v47 = vld [vmem:[%s1 + $0x118] sm:$0xff]
  %v48 = vld [vmem:[%s1 + $0x120] sm:$0xff]
  %v49 = vld [vmem:[%s1 + $0x128] sm:$0xff]
  %v50 = vld [vmem:[%s1 + $0x130] sm:$0xff]
  %v51 = vld [vmem:[%s1 + $0x138] sm:$0xff]
  %v52 = vld [vmem:[%s1 + $0x140] sm:$0xff]
  %v53 = vld [vmem:[%s1 + $0x148] sm:$0xff]
  %v54 = vld [vmem:[%s1 + $0x150] sm:$0xff]
  %v55 = vld [vmem:[%s1 + $0x158] sm:$0xff]
  %v56 = vld [vmem:[%s1 + $0x160] sm:$0xff]
  %v57 = vld [vmem:[%s1 + $0x168] sm:$0xff]
  %v58 = vld [vmem:[%s1 + $0x170] sm:$0xff]
  %v59 = vld [vmem:[%s1 + $0x178] sm:$0xff]
  %v60 = vld [vmem:[%s1 + $0x180] sm:$0xff]
  %v61 = vld [vmem:[%s1 + $0x188] sm:$0xff]
  %v62 = vld [vmem:[%s1 + $0x190] sm:$0xff]
  %v63 = vld [vmem:[%s1 + $0x198] sm:$0xff]
  %v64 = vld [vmem:[%s1 + $0x1a0] sm:$0xff]
  %v65 = vld [vmem:[%s1 + $0x1a8] sm:$0xff]
  %v66 = vld [vmem:[%s1 + $0x1b0] sm:$0xff]
  %v67 = vld [vmem:[%s1 + $0x1b8] sm:$0xff]
  %v68 = vld [vmem:[%s1 + $0x1c0] sm:$0xff]
  %v69 = vld [vmem:[%s1 + $0x1c8] sm:$0xff]
  %v70 = vld [vmem:[%s1 + $0x1d0] sm:$0xff]
  %v71 = vld [vmem:[%s1 + $0x1d8] sm:$0xff]
  %v72 = vld [vmem:[%s1 + $0x1e0] sm:$0xff]
  %v73 = vld [vmem:[%s1 + $0x1e8] sm:$0xff]
  %v74 = vld [vmem:[%s1 + $0x1f0] sm:$0xff]
  %v75 = vld [vmem:[%s1 + $0x1f8] sm:$0xff]
  %v76 = vld [vmem:[%s1 + $0x200] sm:$0xff]
  %v77 = vld [vmem:[%s1 + $0x208] sm:$0xff]
  %v78 = vld [vmem:[%s1 + $0x210] sm:$0xff]
  %v79 = vld [vmem:[%s1 + $0x218] sm:$0xff]
  %v80 = vld [vmem:[%s1 + $0x220] sm:$0xff]
  %v81 = vld [vmem:[%s1 + $0x228] sm:$0xff]
  %v82 = vld [vmem:[%s1 + $0x230] sm:$0xff]
  %v83 = vld [vmem:[%s1 + $0x238] sm:$0xff]
  %v84 = vld [vmem:[%s1 + $0x240] sm:$0xff]
  %v85 = vld [vmem:[%s1 + $0x248] sm:$0xff]
  %v86 = vld [vmem:[%s1 + $0x250] sm:$0xff]
  %v87 = vld [vmem:[%s1 + $0x258] sm:$0xff]
  %v88 = vld [vmem:[%s1 + $0x260] sm:$0xff]
  %v89 = vld [vmem:[%s1 + $0x268] sm:$0xff]
  %v90 = vld [vmem:[%s1 + $0x270] sm:$0xff]
  %v91 = vld [vmem:[%s1 + $0x278] sm:$0xff]
  %v92 = vld [vmem:[%s1 + $0x280] sm:$0xff]
  %v93 = vld [vmem:[%s1 + $0x288] sm:$0xff]
  %v94 = vld [vmem:[%s1 + $0x290] sm:$0xff]
  %v95 = vld [vmem:[%s1 + $0x298] sm:$0xff]
  %v96 = vld [vmem:[%s1 + $0x2a0] sm:$0xff]
  %v97 = vld [vmem:[%s1 + $0x2a8] sm:$0xff]
  %v98 = vld [vmem:[%s1 + $0x2b0] sm:$0xff]
  %v99 = vld [vmem:[%s1 + $0x2b8] sm:$0xff]
  %v100 = vld [vmem:[%s1 + $0x2c0] sm:$0xff]
  %v101 = vld [vmem:[%s1 + $0x2c8] sm:$0xff]
  %v102 = vld [vmem:[%s1 + $0x2d0] sm:$0xff]
  %v103 = vld [vmem:[%s1 + $0x2d8] sm:$0xff]
  %v104 = vld [vmem:[%s1 + $0x2e0] sm:$0xff]
  %v105 = vld [vmem:[%s1 + $0x2e8] sm:$0xff]
  %v106 = vld [vmem:[%s1 + $0x2f0] sm:$0xff]
  %v107 = vld [vmem:[%s1 + $0x2f8] sm:$0xff]
  %v108 = vld [vmem:[%s1 + $0x300] sm:$0xff]
  %v109 = vld [vmem:[%s1 + $0x308] sm:$0xff]
  %v110 = vld [vmem:[%s1 + $0x310] sm:$0xff]
  %v111 = vld [vmem:[%s1 + $0x318] sm:$0xff]
  %v112 = vld [vmem:[%s1 + $0x320] sm:$0xff]
  %v113 = vld [vmem:[%s1 + $0x328] sm:$0xff]
  %v114 = vld [vmem:[%s1 + $0x330] sm:$0xff]
  %v115 = vld [vmem:[%s1 + $0x338] sm:$0xff]
  %v116 = vld [vmem:[%s1 + $0x340] sm:$0xff]
  %v117 = vld [vmem:[%s1 + $0x348] sm:$0xff]
  %v118 = vld [vmem:[%s1 + $0x350] sm:$0xff]
  %v119 = vld [vmem:[%s1 + $0x358] sm:$0xff]
  %v120 = vld [vmem:[%s1 + $0x360] sm:$0xff]
  %v121 = vld [vmem:[%s1 + $0x368] sm:$0xff]
  %v122 = vld [vmem:[%s1 + $0x370] sm:$0xff]
  %v123 = vld [vmem:[%s1 + $0x378] sm:$0xff]
  %v124 = vld [vmem:[%s1 + $0x380] sm:$0xff]
  %v125 = vld [vmem:[%s1 + $0x388] sm:$0xff]
  %v126 = vld [vmem:[%s1 + $0x390] sm:$0xff]
  %v127 = vld [vmem:[%s1 + $0x398] sm:$0xff]
  %v128 = vld [vmem:[%s1 + $0x3a0] sm:$0xff]
  %v129 = vld [vmem:[%s1 + $0x3a8] sm:$0xff]
  %v130 = vld [vmem:[%s1 + $0x3b0] sm:$0xff]
  %v131 = vld [vmem:[%s1 + $0x3b8] sm:$0xff]
  %v132 = vld [vmem:[%s1 + $0x3c0] sm:$0xff]
  %v133 = vld [vmem:[%s1 + $0x3c8] sm:$0xff]
  %v134 = vld [vmem:[%s1 + $0x3d0] sm:$0xff]
  %v135 = vld [vmem:[%s1 + $0x3d8] sm:$0xff]
  %v136 = vld [vmem:[%s1 + $0x3e0] sm:$0xff]
  %v137 = vld [vmem:[%s1 + $0x3e8] sm:$0xff]
  %v138 = vld [vmem:[%s1 + $0x3f0] sm:$0xff]
  %v139 = vld [vmem:[%s1 + $0x3f8] sm:$0xff]
  %v140 = vld [vmem:[%s1 + $0x400] sm:$0xff]
  %v141 = vld [vmem:[%s1 + $0x408] sm:$0xff]
  %v142 = vld [vmem:[%s1 + $0x410] sm:$0xff]
  %v143 = vld [vmem:[%s1 + $0x418] sm:$0xff]
  %v144 = vld [vmem:[%s1 + $0x420] sm:$0xff]
  %v145 = vld [vmem:[%s1 + $0x428] sm:$0xff]
  %v146 = vld [vmem:[%s1 + $0x430] sm:$0xff]
  %v147 = vld [vmem:[%s1 + $0x438] sm:$0xff]
  %v148 = vld [vmem:[%s1 + $0x440] sm:$0xff]
  %v149 = vld [vmem:[%s1 + $0x448] sm:$0xff]
  %v150 = vld [vmem:[%s1 + $0x450] sm:$0xff]
  %v151 = vld [vmem:[%s1 + $0x458] sm:$0xff]
  %v152 = vld [vmem:[%s1 + $0x460] sm:$0xff]
  %v153 = vld [vmem:[%s1 + $0x468] sm:$0xff]
  %v154 = vld [vmem:[%s1 + $0x470] sm:$0xff]
  %v155 = vld [vmem:[%s1 + $0x478] sm:$0xff]
  %v156 = vld [vmem:[%s1 + $0x480] sm:$0xff]
  %v157 = vld [vmem:[%s1 + $0x488] sm:$0xff]
  %v158 = vld [vmem:[%s1 + $0x490] sm:$0xff]
  %v159 = vld [vmem:[%s1 + $0x498] sm:$0xff]
  %v160 = vmax.f32 %v12, 0.0
  %v161 = vmax.f32 %v13, 0.0
  %v162 = vmax.f32 %v14, 0.0
  %v163 = vmax.f32 %v15, 0.0
  %v164 = vmax.f32 %v16, 0.0
  %v165 = vmax.f32 %v17, 0.0
  %v166 = vmax.f32 %v18, 0.0
  %v167 = vmax.f32 %v19, 0.0
  %v168 = vmax.f32 %v20, 0.0
  %v169 = vmax.f32 %v21, 0.0
  %v170 = vmax.f32 %v22, 0.0
  %v171 = vmax.f32 %v23, 0.0
  %v172 = vmax.f32 %v24, 0.0
  %v173 = vmax.f32 %v25, 0.0
  %v174 = vmax.f32 %v26, 0.0
  %v175 = vmax.f32 %v27, 0.0
  %v176 = vmax.f32 %v28, 0.0
  %v177 = vmax.f32 %v29, 0.0
  %v178 = vmax.f32 %v30, 0.0
  %v179 = vmax.f32 %v31, 0.0
  %v180 = vmax.f32 %v32, 0.0
  %v181 = vmax.f32 %v33, 0.0
  %v182 = vmax.f32 %v34, 0.0
  %v183 = vmax.f32 %v35, 0.0
  %v184 = vmax.f32 %v36, 0.0
  %v185 = vmax.f32 %v37, 0.0
  %v186 = vmax.f32 %v38, 0.0
  %v187 = vmax.f32 %v39, 0.0
  %v188 = vmax.f32 %v40, 0.0
  %v189 = vmax.f32 %v41, 0.0
  %v190 = vmax.f32 %v42, 0.0
  %v191 = vmax.f32 %v43, 0.0
  %v192 = vmax.f32 %v44, 0.0
  %v193 = vmax.f32 %v45, 0.0
  %v194 = vmax.f32 %v46, 0.0
  %v195 = vmax.f32 %v47, 0.0
  %v196 = vmax.f32 %v48, 0.0
  %v197 = vmax.f32 %v49, 0.0
  %v198 = vmax.f32 %v50, 0.0
  %v199 = vmax.f32 %v51, 0.0
  %v200 = vmax.f32 %v52, 0.0
  %v201 = vmax.f32 %v53, 0.0
  %v202 = vmax.f32 %v54, 0.0
  %v203 = vmax.f32 %v55, 0.0
  %v204 = vmax.f32 %v56, 0.0
  %v205 = vmax.f32 %v57, 0.0
  %v206 = vmax.f32 %v58, 0.0
  %v207 = vmax.f32 %v59, 0.0
  %v208 = vmax.f32 %v60, 0.0
  %v209 = vmax.f32 %v61, 0.0
  %v210 = vmax.f32 %v62, 0.0
  %v211 = vmax.f32 %v63, 0.0
  %v212 = vmax.f32 %v64, 0.0
  %v213 = vmax.f32 %v65, 0.0
  %v214 = vmax.f32 %v66, 0.0
  %v215 = vmax.f32 %v67, 0.0
  %v216 = vmax.f32 %v68, 0.0
  %v217 = vmax.f32 %v69, 0.0
  %v218 = vmax.f32 %v70, 0.0
  %v219 = vmax.f32 %v71, 0.0
  %v220 = vmax.f32 %v72, 0.0
  %v221 = vmax.f32 %v73, 0.0
  %v222 = vmax.f32 %v74, 0.0
  %v223 = vmax.f32 %v75, 0.0
  %v224 = vmax.f32 %v76, 0.0
  %v225 = vmax.f32 %v77, 0.0
  %v226 = vmax.f32 %v78, 0.0
  %v227 = vmax.f32 %v79, 0.0
  %v228 = vmax.f32 %v80, 0.0
  %v229 = vmax.f32 %v81, 0.0
  %v230 = vmax.f32 %v82, 0.0
  %v231 = vmax.f32 %v83, 0.0
  %v232 = vmax.f32 %v84, 0.0
  %v233 = vmax.f32 %v85, 0.0
  %v234 = vmax.f32 %v86, 0.0
  %v235 = vmax.f32 %v87, 0.0
  %v236 = vmax.f32 %v88, 0.0
  %v237 = vmax.f32 %v89, 0.0
  %v238 = vmax.f32 %v90, 0.0
  %v239 = vmax.f32 %v91, 0.0
  %v240 = vmax.f32 %v92, 0.0
  %v241 = vmax.f32 %v93, 0.0
  %v242 = vmax.f32 %v94, 0.0
  %v243 = vmax.f32 %v95, 0.0
  %v244 = vmax.f32 %v96, 0.0
  %v245 = vmax.f32 %v97, 0.0
  %v246 = vmax.f32 %v98, 0.0
  %v247 = vmax.f32 %v99, 0.0
  %v248 = vmax.f32 %v100, 0.0
  %v249 = vmax.f32 %v101, 0.0
  %v250 = vmax.f32 %v102, 0.0
  %v251 = vmax.f32 %v103, 0.0
  %v252 = vmax.f32 %v104, 0.0
  %v253 = vmax.f32 %v105, 0.0
  %v254 = vmax.f32 %v106, 0.0
  %v255 = vmax.f32 %v107, 0.0
  %v256 = vmax.f32 %v108, 0.0
  %v257 = vmax.f32 %v109, 0.0
  %v258 = vmax.f32 %v110, 0.0
  %v259 = vmax.f32 %v111, 0.0
  %v260 = vmax.f32 %v112, 0.0
  %v261 = vmax.f32 %v113, 0.0
  %v262 = vmax.f32 %v114, 0.0
  %v263 = vmax.f32 %v115, 0.0
  %v264 = vmax.f32 %v116, 0.0
  %v265 = vmax.f32 %v117, 0.0
  %v266 = vmax.f32 %v118, 0.0
  %v267 = vmax.f32 %v119, 0.0
  %v268 = vmax.f32 %v120, 0.0
  %v269 = vmax.f32 %v121, 0.0
  %v270 = vmax.f32 %v122, 0.0
  %v271 = vmax.f32 %v123, 0.0
  %v272 = vmax.f32 %v124, 0.0
  %v273 = vmax.f32 %v125, 0.0
  %v274 = vmax.f32 %v126, 0.0
  %v275 = vmax.f32 %v127, 0.0
  %v276 = vmax.f32 %v128, 0.0
  %v277 = vmax.f32 %v129, 0.0
  %v278 = vmax.f32 %v130, 0.0
  %v279 = vmax.f32 %v131, 0.0
  %v280 = vmax.f32 %v132, 0.0
  %v281 = vmax.f32 %v133, 0.0
  %v282 = vmax.f32 %v134, 0.0
  %v283 = vmax.f32 %v135, 0.0
  %v284 = vmax.f32 %v136, 0.0
  %v285 = vmax.f32 %v137, 0.0
  %v286 = vmax.f32 %v138, 0.0
  %v287 = vmax.f32 %v139, 0.0
  %v288 = vmax.f32 %v140, 0.0
  %v289 = vmax.f32 %v141, 0.0
  %v290 = vmax.f32 %v142, 0.0
  %v291 = vmax.f32 %v143, 0.0
  %v292 = vmax.f32 %v144, 0.0
  %v293 = vmax.f32 %v145, 0.0
  %v294 = vmax.f32 %v146, 0.0
  %v295 = vmax.f32 %v147, 0.0
  %v296 = vmax.f32 %v148, 0.0
  %v297 = vmax.f32 %v149, 0.0
  %v298 = vmax.f32 %v150, 0.0
  %v299 = vmax.f32 %v151, 0.0
  %v300 = vmax.f32 %v152, 0.0
  %v301 = vmax.f32 %v153, 0.0
  %v302 = vmax.f32 %v154, 0.0
  %v303 = vmax.f32 %v155, 0.0
  %v304 = vmax.f32 %v156, 0.0
  %v305 = vmax.f32 %v157, 0.0
  %v306 = vmax.f32 %v158, 0.0
  %v307 = vmax.f32 %v159, 0.0
  %v308 = vpack.c.bf16 %v161, %v160
  %v309 = vpack.c.bf16 %v163, %v162
  %v310 = vpack.c.bf16 %v165, %v164
  %v311 = vpack.c.bf16 %v167, %v166
  %v312 = vpack.c.bf16 %v169, %v168
  %v313 = vpack.c.bf16 %v171, %v170
  %v314 = vpack.c.bf16 %v173, %v172
  %v315 = vpack.c.bf16 %v175, %v174
  %v316 = vpack.c.bf16 %v177, %v176
  %v317 = vpack.c.bf16 %v179, %v178
  %v318 = vpack.c.bf16 %v181, %v180
  %v319 = vpack.c.bf16 %v183, %v182
  %v320 = vpack.c.bf16 %v185, %v184
  %v321 = vpack.c.bf16 %v187, %v186
  %v322 = vpack.c.bf16 %v189, %v188
  %v323 = vpack.c.bf16 %v191, %v190
  %v324 = vpack.c.bf16 %v193, %v192
  %v325 = vpack.c.bf16 %v195, %v194
  %v326 = vpack.c.bf16 %v197, %v196
  %v327 = vpack.c.bf16 %v199, %v198
  %v328 = vpack.c.bf16 %v201, %v200
  %v329 = vpack.c.bf16 %v203, %v202
  %v330 = vpack.c.bf16 %v205, %v204
  %v331 = vpack.c.bf16 %v207, %v206
  %v332 = vpack.c.bf16 %v209, %v208
  %v333 = vpack.c.bf16 %v211, %v210
  %v334 = vpack.c.bf16 %v213, %v212
  %v335 = vpack.c.bf16 %v215, %v214
  %v336 = vpack.c.bf16 %v217, %v216
  %v337 = vpack.c.bf16 %v219, %v218
  %v338 = vpack.c.bf16 %v221, %v220
  %v339 = vpack.c.bf16 %v223, %v222
  %v340 = vpack.c.bf16 %v225, %v224
  %v341 = vpack.c.bf16 %v227, %v226
  %v342 = vpack.c.bf16 %v229, %v228
  %v343 = vpack.c.bf16 %v231, %v230
  %v344 = vpack.c.bf16 %v233, %v232
  %v345 = vpack.c.bf16 %v235, %v234
  %v346 = vpack.c.bf16 %v237, %v236
  %v347 = vpack.c.bf16 %v239, %v238
  %v348 = vpack.c.bf16 %v241, %v240
  %v349 = vpack.c.bf16 %v243, %v242
  %v350 = vpack.c.bf16 %v245, %v244
  %v351 = vpack.c.bf16 %v247, %v246
  %v352 = vpack.c.bf16 %v249, %v248
  %v353 = vpack.c.bf16 %v251, %v250
  %v354 = vpack.c.bf16 %v253, %v252
  %v355 = vpack.c.bf16 %v255, %v254
  %v356 = vpack.c.bf16 %v257, %v256
  %v357 = vpack.c.bf16 %v259, %v258
  %v358 = vpack.c.bf16 %v261, %v260
  %v359 = vpack.c.bf16 %v263, %v262
  %v360 = vpack.c.bf16 %v265, %v264
  %v361 = vpack.c.bf16 %v267, %v266
  %v362 = vpack.c.bf16 %v269, %v268
  %v363 = vpack.c.bf16 %v271, %v270
  %v364 = vpack.c.bf16 %v273, %v272
  %v365 = vpack.c.bf16 %v275, %v274
  %v366 = vpack.c.bf16 %v277, %v276
  %v367 = vpack.c.bf16 %v279, %v278
  %v368 = vpack.c.bf16 %v281, %v280
  %v369 = vpack.c.bf16 %v283, %v282
  %v370 = vpack.c.bf16 %v285, %v284
  %v371 = vpack.c.bf16 %v287, %v286
  %v372 = vpack.c.bf16 %v289, %v288
  %v373 = vpack.c.bf16 %v291, %v290
  %v374 = vpack.c.bf16 %v293, %v292
  %v375 = vpack.c.bf16 %v295, %v294
  %v376 = vpack.c.bf16 %v297, %v296
  %v377 = vpack.c.bf16 %v299, %v298
  %v378 = vpack.c.bf16 %v301, %v300
  %v379 = vpack.c.bf16 %v303, %v302
  %v380 = vpack.c.bf16 %v305, %v304
  %v381 = vpack.c.bf16 %v307, %v306
  %v382 = vld [vmem:[%s0] sm:$0xff]
  %v383 = vld [vmem:[%s0 + $0x8] sm:$0xff]
  %v384 = vld [vmem:[%s0 + $0x10] sm:$0xff]
  %v385 = vld [vmem:[%s0 + $0x18] sm:$0xff]
  %v386 = vld [vmem:[%s0 + $0x20] sm:$0xff]
  %v387 = vld [vmem:[%s0 + $0x28] sm:$0xff]
  %v388 = vld [vmem:[%s0 + $0x30] sm:$0xff]
  %v389 = vld [vmem:[%s0 + $0x38] sm:$0xff]
  %v390 = vld [vmem:[%s0 + $0x40] sm:$0xff]
  %v391 = vld [vmem:[%s0 + $0x48] sm:$0xff]
  %v392 = vld [vmem:[%s0 + $0x50] sm:$0xff]
  %v393 = vld [vmem:[%s0 + $0x58] sm:$0xff]
  %v394 = vld [vmem:[%s0 + $0x60] sm:$0xff]
  %v395 = vld [vmem:[%s0 + $0x68] sm:$0xff]
  %v396 = vld [vmem:[%s0 + $0x70] sm:$0xff]
  %v397 = vld [vmem:[%s0 + $0x78] sm:$0xff]
  %v398 = vld [vmem:[%s0 + $0x80] sm:$0xff]
  %v399 = vld [vmem:[%s0 + $0x88] sm:$0xff]
  %v400 = vld [vmem:[%s0 + $0x90] sm:$0xff]
  %v401 = vld [vmem:[%s0 + $0x98] sm:$0xff]
  %v402 = vld [vmem:[%s0 + $0xa0] sm:$0xff]
  %v403 = vld [vmem:[%s0 + $0xa8] sm:$0xff]
  %v404 = vld [vmem:[%s0 + $0xb0] sm:$0xff]
  %v405 = vld [vmem:[%s0 + $0xb8] sm:$0xff]
  %v406 = vld [vmem:[%s0 + $0xc0] sm:$0xff]
  %v407 = vld [vmem:[%s0 + $0xc8] sm:$0xff]
  %v408 = vld [vmem:[%s0 + $0xd0] sm:$0xff]
  %v409 = vld [vmem:[%s0 + $0xd8] sm:$0xff]
  %v410 = vld [vmem:[%s0 + $0xe0] sm:$0xff]
  %v411 = vld [vmem:[%s0 + $0xe8] sm:$0xff]
  %v412 = vld [vmem:[%s0 + $0xf0] sm:$0xff]
  %v413 = vld [vmem:[%s0 + $0xf8] sm:$0xff]
  %v414 = vld [vmem:[%s0 + $0x100] sm:$0xff]
  %v415 = vld [vmem:[%s0 + $0x108] sm:$0xff]
  %v416 = vld [vmem:[%s0 + $0x110] sm:$0xff]
  %v417 = vld [vmem:[%s0 + $0x118] sm:$0xff]
  %v418 = vld [vmem:[%s0 + $0x120] sm:$0xff]
  %v419 = vld [vmem:[%s0 + $0x128] sm:$0xff]
  %v420 = vld [vmem:[%s0 + $0x130] sm:$0xff]
  %v421 = vld [vmem:[%s0 + $0x138] sm:$0xff]
  %v422 = vld [vmem:[%s0 + $0x140] sm:$0xff]
  %v423 = vld [vmem:[%s0 + $0x148] sm:$0xff]
  %v424 = vld [vmem:[%s0 + $0x150] sm:$0xff]
  %v425 = vld [vmem:[%s0 + $0x158] sm:$0xff]
  %v426 = vld [vmem:[%s0 + $0x160] sm:$0xff]
  %v427 = vld [vmem:[%s0 + $0x168] sm:$0xff]
  %v428 = vld [vmem:[%s0 + $0x170] sm:$0xff]
  %v429 = vld [vmem:[%s0 + $0x178] sm:$0xff]
  %v430 = vld [vmem:[%s0 + $0x180] sm:$0xff]
  %v431 = vld [vmem:[%s0 + $0x188] sm:$0xff]
  %v432 = vld [vmem:[%s0 + $0x190] sm:$0xff]
  %v433 = vld [vmem:[%s0 + $0x198] sm:$0xff]
  %v434 = vld [vmem:[%s0 + $0x1a0] sm:$0xff]
  %v435 = vld [vmem:[%s0 + $0x1a8] sm:$0xff]
  %v436 = vld [vmem:[%s0 + $0x1b0] sm:$0xff]
  %v437 = vld [vmem:[%s0 + $0x1b8] sm:$0xff]
  %v438 = vld [vmem:[%s0 + $0x1c0] sm:$0xff]
  %v439 = vld [vmem:[%s0 + $0x1c8] sm:$0xff]
  %v440 = vld [vmem:[%s0 + $0x1d0] sm:$0xff]
  %v441 = vld [vmem:[%s0 + $0x1d8] sm:$0xff]
  %v442 = vld [vmem:[%s0 + $0x1e0] sm:$0xff]
  %v443 = vld [vmem:[%s0 + $0x1e8] sm:$0xff]
  %v444 = vld [vmem:[%s0 + $0x1f0] sm:$0xff]
  %v445 = vld [vmem:[%s0 + $0x1f8] sm:$0xff]
  %v446 = vld [vmem:[%s0 + $0x200] sm:$0xff]
  %v447 = vld [vmem:[%s0 + $0x208] sm:$0xff]
  %v448 = vld [vmem:[%s0 + $0x210] sm:$0xff]
  %v449 = vld [vmem:[%s0 + $0x218] sm:$0xff]
  %v450 = vld [vmem:[%s0 + $0x220] sm:$0xff]
  %v451 = vld [vmem:[%s0 + $0x228] sm:$0xff]
  %v452 = vld [vmem:[%s0 + $0x230] sm:$0xff]
  %v453 = vld [vmem:[%s0 + $0x238] sm:$0xff]
  %v454 = vld [vmem:[%s0 + $0x240] sm:$0xff]
  %v455 = vld [vmem:[%s0 + $0x248] sm:$0xff]
  %v456 = vld [vmem:[%s0 + $0x250] sm:$0xff]
  %v457 = vld [vmem:[%s0 + $0x258] sm:$0xff]
  %v458 = vld [vmem:[%s0 + $0x260] sm:$0xff]
  %v459 = vld [vmem:[%s0 + $0x268] sm:$0xff]
  %v460 = vld [vmem:[%s0 + $0x270] sm:$0xff]
  %v461 = vld [vmem:[%s0 + $0x278] sm:$0xff]
  %v542 = vunpack.c.l.b16 %v382
  %v543 = vunpack.c.h.b16 %v382
  %v544 = vunpack.c.l.b16 %v383
  %v545 = vunpack.c.h.b16 %v383
  %v546 = vunpack.c.l.b16 %v384
  %v547 = vunpack.c.h.b16 %v384
  %v548 = vunpack.c.l.b16 %v385
  %v549 = vunpack.c.h.b16 %v385
  %v550 = vunpack.c.l.b16 %v386
  %v551 = vunpack.c.h.b16 %v386
  %v552 = vunpack.c.l.b16 %v387
  %v553 = vunpack.c.h.b16 %v387
  %v554 = vunpack.c.l.b16 %v388
  %v555 = vunpack.c.h.b16 %v388
  %v556 = vunpack.c.l.b16 %v389
  %v557 = vunpack.c.h.b16 %v389
  %v558 = vunpack.c.l.b16 %v390
  %v559 = vunpack.c.h.b16 %v390
  %v560 = vunpack.c.l.b16 %v391
  %v561 = vunpack.c.h.b16 %v391
  %v562 = vunpack.c.l.b16 %v392
  %v563 = vunpack.c.h.b16 %v392
  %v564 = vunpack.c.l.b16 %v393
  %v565 = vunpack.c.h.b16 %v393
  %v566 = vunpack.c.l.b16 %v394
  %v567 = vunpack.c.h.b16 %v394
  %v568 = vunpack.c.l.b16 %v395
  %v569 = vunpack.c.h.b16 %v395
  %v570 = vunpack.c.l.b16 %v396
  %v571 = vunpack.c.h.b16 %v396
  %v572 = vunpack.c.l.b16 %v397
  %v573 = vunpack.c.h.b16 %v397
  %v574 = vunpack.c.l.b16 %v398
  %v575 = vunpack.c.h.b16 %v398
  %v576 = vunpack.c.l.b16 %v399
  %v577 = vunpack.c.h.b16 %v399
  %v578 = vunpack.c.l.b16 %v400
  %v579 = vunpack.c.h.b16 %v400
  %v580 = vunpack.c.l.b16 %v401
  %v581 = vunpack.c.h.b16 %v401
  %v582 = vunpack.c.l.b16 %v402
  %v583 = vunpack.c.h.b16 %v402
  %v584 = vunpack.c.l.b16 %v403
  %v585 = vunpack.c.h.b16 %v403
  %v586 = vunpack.c.l.b16 %v404
  %v587 = vunpack.c.h.b16 %v404
  %v588 = vunpack.c.l.b16 %v405
  %v589 = vunpack.c.h.b16 %v405
  %v590 = vunpack.c.l.b16 %v406
  %v591 = vunpack.c.h.b16 %v406
  %v592 = vunpack.c.l.b16 %v407
  %v593 = vunpack.c.h.b16 %v407
  %v594 = vunpack.c.l.b16 %v408
  %v595 = vunpack.c.h.b16 %v408
  %v596 = vunpack.c.l.b16 %v409
  %v597 = vunpack.c.h.b16 %v409
  %v598 = vunpack.c.l.b16 %v410
  %v599 = vunpack.c.h.b16 %v410
  %v600 = vunpack.c.l.b16 %v411
  %v601 = vunpack.c.h.b16 %v411
  %v602 = vunpack.c.l.b16 %v412
  %v603 = vunpack.c.h.b16 %v412
  %v604 = vunpack.c.l.b16 %v413
  %v605 = vunpack.c.h.b16 %v413
  %v606 = vunpack.c.l.b16 %v414
  %v607 = vunpack.c.h.b16 %v414
  %v608 = vunpack.c.l.b16 %v415
  %v609 = vunpack.c.h.b16 %v415
  %v610 = vunpack.c.l.b16 %v416
  %v611 = vunpack.c.h.b16 %v416
  %v612 = vunpack.c.l.b16 %v417
  %v613 = vunpack.c.h.b16 %v417
  %v614 = vunpack.c.l.b16 %v418
  %v615 = vunpack.c.h.b16 %v418
  %v616 = vunpack.c.l.b16 %v419
  %v617 = vunpack.c.h.b16 %v419
  %v618 = vunpack.c.l.b16 %v420
  %v619 = vunpack.c.h.b16 %v420
  %v620 = vunpack.c.l.b16 %v421
  %v621 = vunpack.c.h.b16 %v421
  %v622 = vunpack.c.l.b16 %v422
  %v623 = vunpack.c.h.b16 %v422
  %v624 = vunpack.c.l.b16 %v423
  %v625 = vunpack.c.h.b16 %v423
  %v626 = vunpack.c.l.b16 %v424
  %v627 = vunpack.c.h.b16 %v424
  %v628 = vunpack.c.l.b16 %v425
  %v629 = vunpack.c.h.b16 %v425
  %v630 = vunpack.c.l.b16 %v426
  %v631 = vunpack.c.h.b16 %v426
  %v632 = vunpack.c.l.b16 %v427
  %v633 = vunpack.c.h.b16 %v427
  %v634 = vunpack.c.l.b16 %v428
  %v635 = vunpack.c.h.b16 %v428
  %v636 = vunpack.c.l.b16 %v429
  %v637 = vunpack.c.h.b16 %v429
  %v638 = vunpack.c.l.b16 %v430
  %v639 = vunpack.c.h.b16 %v430
  %v640 = vunpack.c.l.b16 %v431
  %v641 = vunpack.c.h.b16 %v431
  %v642 = vunpack.c.l.b16 %v432
  %v643 = vunpack.c.h.b16 %v432
  %v644 = vunpack.c.l.b16 %v433
  %v645 = vunpack.c.h.b16 %v433
  %v646 = vunpack.c.l.b16 %v434
  %v647 = vunpack.c.h.b16 %v434
  %v648 = vunpack.c.l.b16 %v435
  %v649 = vunpack.c.h.b16 %v435
  %v650 = vunpack.c.l.b16 %v436
  %v651 = vunpack.c.h.b16 %v436
  %v652 = vunpack.c.l.b16 %v437
  %v653 = vunpack.c.h.b16 %v437
  %v654 = vunpack.c.l.b16 %v438
  %v655 = vunpack.c.h.b16 %v438
  %v656 = vunpack.c.l.b16 %v439
  %v657 = vunpack.c.h.b16 %v439
  %v658 = vunpack.c.l.b16 %v440
  %v659 = vunpack.c.h.b16 %v440
  %v660 = vunpack.c.l.b16 %v441
  %v661 = vunpack.c.h.b16 %v441
  %v662 = vunpack.c.l.b16 %v442
  %v663 = vunpack.c.h.b16 %v442
  %v664 = vunpack.c.l.b16 %v443
  %v665 = vunpack.c.h.b16 %v443
  %v666 = vunpack.c.l.b16 %v444
  %v667 = vunpack.c.h.b16 %v444
  %v668 = vunpack.c.l.b16 %v445
  %v669 = vunpack.c.h.b16 %v445
  %v670 = vunpack.c.l.b16 %v446
  %v671 = vunpack.c.h.b16 %v446
  %v672 = vunpack.c.l.b16 %v447
  %v673 = vunpack.c.h.b16 %v447
  %v674 = vunpack.c.l.b16 %v448
  %v675 = vunpack.c.h.b16 %v448
  %v676 = vunpack.c.l.b16 %v449
  %v677 = vunpack.c.h.b16 %v449
  %v678 = vunpack.c.l.b16 %v450
  %v679 = vunpack.c.h.b16 %v450
  %v680 = vunpack.c.l.b16 %v451
  %v681 = vunpack.c.h.b16 %v451
  %v682 = vunpack.c.l.b16 %v452
  %v683 = vunpack.c.h.b16 %v452
  %v684 = vunpack.c.l.b16 %v453
  %v685 = vunpack.c.h.b16 %v453
  %v686 = vunpack.c.l.b16 %v454
  %v687 = vunpack.c.h.b16 %v454
  %v688 = vunpack.c.l.b16 %v455
  %v689 = vunpack.c.h.b16 %v455
  %v690 = vunpack.c.l.b16 %v456
  %v691 = vunpack.c.h.b16 %v456
  %v692 = vunpack.c.l.b16 %v457
  %v693 = vunpack.c.h.b16 %v457
  %v694 = vunpack.c.l.b16 %v458
  %v695 = vunpack.c.h.b16 %v458
  %v696 = vunpack.c.l.b16 %v459
  %v697 = vunpack.c.h.b16 %v459
  %v698 = vunpack.c.l.b16 %v460
  %v699 = vunpack.c.h.b16 %v460
  %v700 = vunpack.c.l.b16 %v461
  %v701 = vunpack.c.h.b16 %v461
  %v702 = vpack.c.b16 %v552, %v542
  %v703 = vpack.c.b16 %v553, %v543
  %v704 = vpack.c.b16 %v554, %v544
  %v705 = vpack.c.b16 %v555, %v545
  %v706 = vpack.c.b16 %v556, %v546
  %v707 = vpack.c.b16 %v557, %v547
  %v708 = vpack.c.b16 %v558, %v548
  %v709 = vpack.c.b16 %v559, %v549
  %v710 = vpack.c.b16 %v560, %v550
  %v711 = vpack.c.b16 %v561, %v551
  %v712 = vpack.c.b16 %v572, %v562
  %v713 = vpack.c.b16 %v573, %v563
  %v714 = vpack.c.b16 %v574, %v564
  %v715 = vpack.c.b16 %v575, %v565
  %v716 = vpack.c.b16 %v576, %v566
  %v717 = vpack.c.b16 %v577, %v567
  %v718 = vpack.c.b16 %v578, %v568
  %v719 = vpack.c.b16 %v579, %v569
  %v720 = vpack.c.b16 %v580, %v570
  %v721 = vpack.c.b16 %v581, %v571
  %v722 = vpack.c.b16 %v592, %v582
  %v723 = vpack.c.b16 %v593, %v583
  %v724 = vpack.c.b16 %v594, %v584
  %v725 = vpack.c.b16 %v595, %v585
  %v726 = vpack.c.b16 %v596, %v586
  %v727 = vpack.c.b16 %v597, %v587
  %v728 = vpack.c.b16 %v598, %v588
  %v729 = vpack.c.b16 %v599, %v589
  %v730 = vpack.c.b16 %v600, %v590
  %v731 = vpack.c.b16 %v601, %v591
  %v732 = vpack.c.b16 %v612, %v602
  %v733 = vpack.c.b16 %v613, %v603
  %v734 = vpack.c.b16 %v614, %v604
  %v735 = vpack.c.b16 %v615, %v605
  %v736 = vpack.c.b16 %v616, %v606
  %v737 = vpack.c.b16 %v617, %v607
  %v738 = vpack.c.b16 %v618, %v608
  %v739 = vpack.c.b16 %v619, %v609
  %v740 = vpack.c.b16 %v620, %v610
  %v741 = vpack.c.b16 %v621, %v611
  %v742 = vpack.c.b16 %v632, %v622
  %v743 = vpack.c.b16 %v633, %v623
  %v744 = vpack.c.b16 %v634, %v624
  %v745 = vpack.c.b16 %v635, %v625
  %v746 = vpack.c.b16 %v636, %v626
  %v747 = vpack.c.b16 %v637, %v627
  %v748 = vpack.c.b16 %v638, %v628
  %v749 = vpack.c.b16 %v639, %v629
  %v750 = vpack.c.b16 %v640, %v630
  %v751 = vpack.c.b16 %v641, %v631
  %v752 = vpack.c.b16 %v652, %v642
  %v753 = vpack.c.b16 %v653, %v643
  %v754 = vpack.c.b16 %v654, %v644
  %v755 = vpack.c.b16 %v655, %v645
  %v756 = vpack.c.b16 %v656, %v646
  %v757 = vpack.c.b16 %v657, %v647
  %v758 = vpack.c.b16 %v658, %v648
  %v759 = vpack.c.b16 %v659, %v649
  %v760 = vpack.c.b16 %v660, %v650
  %v761 = vpack.c.b16 %v661, %v651
  %v762 = vpack.c.b16 %v672, %v662
  %v763 = vpack.c.b16 %v673, %v663
  %v764 = vpack.c.b16 %v674, %v664
  %v765 = vpack.c.b16 %v675, %v665
  %v766 = vpack.c.b16 %v676, %v666
  %v767 = vpack.c.b16 %v677, %v667
  %v768 = vpack.c.b16 %v678, %v668
  %v769 = vpack.c.b16 %v679, %v669
  %v770 = vpack.c.b16 %v680, %v670
  %v771 = vpack.c.b16 %v681, %v671
  %v772 = vpack.c.b16 %v692, %v682
  %v773 = vpack.c.b16 %v693, %v683
  %v774 = vpack.c.b16 %v694, %v684
  %v775 = vpack.c.b16 %v695, %v685
  %v776 = vpack.c.b16 %v696, %v686
  %v777 = vpack.c.b16 %v697, %v687
  %v778 = vpack.c.b16 %v698, %v688
  %v779 = vpack.c.b16 %v699, %v689
  %v780 = vpack.c.b16 %v700, %v690
  %v781 = vpack.c.b16 %v701, %v691
  %vm854 = vcmask 261120
  %v856 = vsel %vm854, %v711, 0
  %v859 = vsel %vm854, %v721, 0
  %v862 = vsel %vm854, %v731, 0
  %v865 = vsel %vm854, %v741, 0
  %v868 = vsel %vm854, %v751, 0
  %v871 = vsel %vm854, %v761, 0
  %v874 = vsel %vm854, %v771, 0
  %v877 = vsel %vm854, %v781, 0
  %879 = vmatpush.bf16.msra.mxu0 %v315
  %880 = vmatpush.bf16.msra.mxu0 %v314
  %881 = vmatpush.bf16.msra.mxu0 %v313
  %882 = vmatpush.bf16.msra.mxu0 %v312
  %883 = vmatpush.bf16.msra.mxu0 %v311
  %884 = vmatpush.bf16.msra.mxu0 %v310
  %885 = vmatpush.bf16.msra.mxu0 %v309
  %886 = vmatpush.bf16.msra.mxu0 %v308
  %887 = vmatmul.bf16.gmra.mxu0 %v702
  %v888 = vpop.f32.mrf.mxu0
  %v889 = vadd.f32 0.0, %v888
  %v890 = vpop.f32.mrf.mxu0
  %v891 = vadd.f32 0.0, %v890
  %892 = vmatmul.bf16.gmra.mxu0 %v712
  %v893 = vpop.f32.mrf.mxu0
  %v894 = vadd.f32 0.0, %v893
  %v895 = vpop.f32.mrf.mxu0
  %v896 = vadd.f32 0.0, %v895
  %897 = vmatmul.bf16.gmra.mxu0 %v722
  %v898 = vpop.f32.mrf.mxu0
  %v899 = vadd.f32 0.0, %v898
  %v900 = vpop.f32.mrf.mxu0
  %v901 = vadd.f32 0.0, %v900
  %902 = vmatmul.bf16.gmra.mxu0 %v732
  %v903 = vpop.f32.mrf.mxu0
  %v904 = vadd.f32 0.0, %v903
  %v905 = vpop.f32.mrf.mxu0
  %v906 = vadd.f32 0.0, %v905
  %907 = vmatmul.bf16.gmra.mxu0 %v742
  %v908 = vpop.f32.mrf.mxu0
  %v909 = vadd.f32 0.0, %v908
  %v910 = vpop.f32.mrf.mxu0
  %v911 = vadd.f32 0.0, %v910
  %912 = vmatmul.bf16.gmra.mxu0 %v752
  %v913 = vpop.f32.mrf.mxu0
  %v914 = vadd.f32 0.0, %v913
  %v915 = vpop.f32.mrf.mxu0
  %v916 = vadd.f32 0.0, %v915
  %917 = vmatmul.bf16.gmra.mxu0 %v762
  %v918 = vpop.f32.mrf.mxu0
  %v919 = vadd.f32 0.0, %v918
  %v920 = vpop.f32.mrf.mxu0
  %v921 = vadd.f32 0.0, %v920
  %922 = vmatmul.bf16.gmra.mxu0 %v772
  %v923 = vpop.f32.mrf.mxu0
  %v924 = vadd.f32 0.0, %v923
  %v925 = vpop.f32.mrf.mxu0
  %v926 = vadd.f32 0.0, %v925
  %927 = vdwg.mxu0
  %928 = vmatpush.bf16.msra.mxu0 %v323
  %929 = vmatpush.bf16.msra.mxu0 %v322
  %930 = vmatpush.bf16.msra.mxu0 %v321
  %931 = vmatpush.bf16.msra.mxu0 %v320
  %932 = vmatpush.bf16.msra.mxu0 %v319
  %933 = vmatpush.bf16.msra.mxu0 %v318
  %934 = vmatpush.bf16.msra.mxu0 %v317
  %935 = vmatpush.bf16.msra.mxu0 %v316
  %936 = vmatmul.bf16.gmra.mxu0 %v703
  %v937 = vpop.f32.mrf.mxu0
  %v938 = vadd.f32 %v889, %v937
  %v939 = vpop.f32.mrf.mxu0
  %v940 = vadd.f32 %v891, %v939
  %941 = vmatmul.bf16.gmra.mxu0 %v713
  %v942 = vpop.f32.mrf.mxu0
  %v943 = vadd.f32 %v894, %v942
  %v944 = vpop.f32.mrf.mxu0
  %v945 = vadd.f32 %v896, %v944
  %946 = vmatmul.bf16.gmra.mxu0 %v723
  %v947 = vpop.f32.mrf.mxu0
  %v948 = vadd.f32 %v899, %v947
  %v949 = vpop.f32.mrf.mxu0
  %v950 = vadd.f32 %v901, %v949
  %951 = vmatmul.bf16.gmra.mxu0 %v733
  %v952 = vpop.f32.mrf.mxu0
  %v953 = vadd.f32 %v904, %v952
  %v954 = vpop.f32.mrf.mxu0
  %v955 = vadd.f32 %v906, %v954
  %956 = vmatmul.bf16.gmra.mxu0 %v743
  %v957 = vpop.f32.mrf.mxu0
  %v958 = vadd.f32 %v909, %v957
  %v959 = vpop.f32.mrf.mxu0
  %v960 = vadd.f32 %v911, %v959
  %961 = vmatmul.bf16.gmra.mxu0 %v753
  %v962 = vpop.f32.mrf.mxu0
  %v963 = vadd.f32 %v914, %v962
  %v964 = vpop.f32.mrf.mxu0
  %v965 = vadd.f32 %v916, %v964
  %966 = vmatmul.bf16.gmra.mxu0 %v763
  %v967 = vpop.f32.mrf.mxu0
  %v968 = vadd.f32 %v919, %v967
  %v969 = vpop.f32.mrf.mxu0
  %v970 = vadd.f32 %v921, %v969
  %971 = vmatmul.bf16.gmra.mxu0 %v773
  %v972 = vpop.f32.mrf.mxu0
  %v973 = vadd.f32 %v924, %v972
  %v974 = vpop.f32.mrf.mxu0
  %v975 = vadd.f32 %v926, %v974
  %976 = vdwg.mxu0
  %977 = vmatpush.bf16.msra.mxu0 %v331
  %978 = vmatpush.bf16.msra.mxu0 %v330
  %979 = vmatpush.bf16.msra.mxu0 %v329
  %980 = vmatpush.bf16.msra.mxu0 %v328
  %981 = vmatpush.bf16.msra.mxu0 %v327
  %982 = vmatpush.bf16.msra.mxu0 %v326
  %983 = vmatpush.bf16.msra.mxu0 %v325
  %984 = vmatpush.bf16.msra.mxu0 %v324
  %985 = vmatmul.bf16.gmra.mxu0 %v704
  %v986 = vpop.f32.mrf.mxu0
  %v987 = vadd.f32 %v938, %v986
  %v988 = vpop.f32.mrf.mxu0
  %v989 = vadd.f32 %v940, %v988
  %990 = vmatmul.bf16.gmra.mxu0 %v714
  %v991 = vpop.f32.mrf.mxu0
  %v992 = vadd.f32 %v943, %v991
  %v993 = vpop.f32.mrf.mxu0
  %v994 = vadd.f32 %v945, %v993
  %995 = vmatmul.bf16.gmra.mxu0 %v724
  %v996 = vpop.f32.mrf.mxu0
  %v997 = vadd.f32 %v948, %v996
  %v998 = vpop.f32.mrf.mxu0
  %v999 = vadd.f32 %v950, %v998
  %1000 = vmatmul.bf16.gmra.mxu0 %v734
  %v1001 = vpop.f32.mrf.mxu0
  %v1002 = vadd.f32 %v953, %v1001
  %v1003 = vpop.f32.mrf.mxu0
  %v1004 = vadd.f32 %v955, %v1003
  %1005 = vmatmul.bf16.gmra.mxu0 %v744
  %v1006 = vpop.f32.mrf.mxu0
  %v1007 = vadd.f32 %v958, %v1006
  %v1008 = vpop.f32.mrf.mxu0
  %v1009 = vadd.f32 %v960, %v1008
  %1010 = vmatmul.bf16.gmra.mxu0 %v754
  %v1011 = vpop.f32.mrf.mxu0
  %v1012 = vadd.f32 %v963, %v1011
  %v1013 = vpop.f32.mrf.mxu0
  %v1014 = vadd.f32 %v965, %v1013
  %1015 = vmatmul.bf16.gmra.mxu0 %v764
  %v1016 = vpop.f32.mrf.mxu0
  %v1017 = vadd.f32 %v968, %v1016
  %v1018 = vpop.f32.mrf.mxu0
  %v1019 = vadd.f32 %v970, %v1018
  %1020 = vmatmul.bf16.gmra.mxu0 %v774
  %v1021 = vpop.f32.mrf.mxu0
  %v1022 = vadd.f32 %v973, %v1021
  %v1023 = vpop.f32.mrf.mxu0
  %v1024 = vadd.f32 %v975, %v1023
  %1025 = vdwg.mxu0
  %1026 = vmatpush.bf16.msra.mxu0 %v339
  %1027 = vmatpush.bf16.msra.mxu0 %v338
  %1028 = vmatpush.bf16.msra.mxu0 %v337
  %1029 = vmatpush.bf16.msra.mxu0 %v336
  %1030 = vmatpush.bf16.msra.mxu0 %v335
  %1031 = vmatpush.bf16.msra.mxu0 %v334
  %1032 = vmatpush.bf16.msra.mxu0 %v333
  %1033 = vmatpush.bf16.msra.mxu0 %v332
  %1034 = vmatmul.bf16.gmra.mxu0 %v705
  %v1035 = vpop.f32.mrf.mxu0
  %v1036 = vadd.f32 %v987, %v1035
  %v1037 = vpop.f32.mrf.mxu0
  %v1038 = vadd.f32 %v989, %v1037
  %1039 = vmatmul.bf16.gmra.mxu0 %v715
  %v1040 = vpop.f32.mrf.mxu0
  %v1041 = vadd.f32 %v992, %v1040
  %v1042 = vpop.f32.mrf.mxu0
  %v1043 = vadd.f32 %v994, %v1042
  %1044 = vmatmul.bf16.gmra.mxu0 %v725
  %v1045 = vpop.f32.mrf.mxu0
  %v1046 = vadd.f32 %v997, %v1045
  %v1047 = vpop.f32.mrf.mxu0
  %v1048 = vadd.f32 %v999, %v1047
  %1049 = vmatmul.bf16.gmra.mxu0 %v735
  %v1050 = vpop.f32.mrf.mxu0
  %v1051 = vadd.f32 %v1002, %v1050
  %v1052 = vpop.f32.mrf.mxu0
  %v1053 = vadd.f32 %v1004, %v1052
  %1054 = vmatmul.bf16.gmra.mxu0 %v745
  %v1055 = vpop.f32.mrf.mxu0
  %v1056 = vadd.f32 %v1007, %v1055
  %v1057 = vpop.f32.mrf.mxu0
  %v1058 = vadd.f32 %v1009, %v1057
  %1059 = vmatmul.bf16.gmra.mxu0 %v755
  %v1060 = vpop.f32.mrf.mxu0
  %v1061 = vadd.f32 %v1012, %v1060
  %v1062 = vpop.f32.mrf.mxu0
  %v1063 = vadd.f32 %v1014, %v1062
  %1064 = vmatmul.bf16.gmra.mxu0 %v765
  %v1065 = vpop.f32.mrf.mxu0
  %v1066 = vadd.f32 %v1017, %v1065
  %v1067 = vpop.f32.mrf.mxu0
  %v1068 = vadd.f32 %v1019, %v1067
  %1069 = vmatmul.bf16.gmra.mxu0 %v775
  %v1070 = vpop.f32.mrf.mxu0
  %v1071 = vadd.f32 %v1022, %v1070
  %v1072 = vpop.f32.mrf.mxu0
  %v1073 = vadd.f32 %v1024, %v1072
  %1074 = vdwg.mxu0
  %1075 = vmatpush.bf16.msra.mxu0 %v347
  %1076 = vmatpush.bf16.msra.mxu0 %v346
  %1077 = vmatpush.bf16.msra.mxu0 %v345
  %1078 = vmatpush.bf16.msra.mxu0 %v344
  %1079 = vmatpush.bf16.msra.mxu0 %v343
  %1080 = vmatpush.bf16.msra.mxu0 %v342
  %1081 = vmatpush.bf16.msra.mxu0 %v341
  %1082 = vmatpush.bf16.msra.mxu0 %v340
  %1083 = vmatmul.bf16.gmra.mxu0 %v706
  %v1084 = vpop.f32.mrf.mxu0
  %v1085 = vadd.f32 %v1036, %v1084
  %v1086 = vpop.f32.mrf.mxu0
  %v1087 = vadd.f32 %v1038, %v1086
  %1088 = vmatmul.bf16.gmra.mxu0 %v716
  %v1089 = vpop.f32.mrf.mxu0
  %v1090 = vadd.f32 %v1041, %v1089
  %v1091 = vpop.f32.mrf.mxu0
  %v1092 = vadd.f32 %v1043, %v1091
  %1093 = vmatmul.bf16.gmra.mxu0 %v726
  %v1094 = vpop.f32.mrf.mxu0
  %v1095 = vadd.f32 %v1046, %v1094
  %v1096 = vpop.f32.mrf.mxu0
  %v1097 = vadd.f32 %v1048, %v1096
  %1098 = vmatmul.bf16.gmra.mxu0 %v736
  %v1099 = vpop.f32.mrf.mxu0
  %v1100 = vadd.f32 %v1051, %v1099
  %v1101 = vpop.f32.mrf.mxu0
  %v1102 = vadd.f32 %v1053, %v1101
  %1103 = vmatmul.bf16.gmra.mxu0 %v746
  %v1104 = vpop.f32.mrf.mxu0
  %v1105 = vadd.f32 %v1056, %v1104
  %v1106 = vpop.f32.mrf.mxu0
  %v1107 = vadd.f32 %v1058, %v1106
  %1108 = vmatmul.bf16.gmra.mxu0 %v756
  %v1109 = vpop.f32.mrf.mxu0
  %v1110 = vadd.f32 %v1061, %v1109
  %v1111 = vpop.f32.mrf.mxu0
  %v1112 = vadd.f32 %v1063, %v1111
  %1113 = vmatmul.bf16.gmra.mxu0 %v766
  %v1114 = vpop.f32.mrf.mxu0
  %v1115 = vadd.f32 %v1066, %v1114
  %v1116 = vpop.f32.mrf.mxu0
  %v1117 = vadd.f32 %v1068, %v1116
  %1118 = vmatmul.bf16.gmra.mxu0 %v776
  %v1119 = vpop.f32.mrf.mxu0
  %v1120 = vadd.f32 %v1071, %v1119
  %v1121 = vpop.f32.mrf.mxu0
  %v1122 = vadd.f32 %v1073, %v1121
  %1123 = vdwg.mxu0
  %1124 = vmatpush.bf16.msra.mxu0 %v355
  %1125 = vmatpush.bf16.msra.mxu0 %v354
  %1126 = vmatpush.bf16.msra.mxu0 %v353
  %1127 = vmatpush.bf16.msra.mxu0 %v352
  %1128 = vmatpush.bf16.msra.mxu0 %v351
  %1129 = vmatpush.bf16.msra.mxu0 %v350
  %1130 = vmatpush.bf16.msra.mxu0 %v349
  %1131 = vmatpush.bf16.msra.mxu0 %v348
  %1132 = vmatmul.bf16.gmra.mxu0 %v707
  %v1133 = vpop.f32.mrf.mxu0
  %v1134 = vadd.f32 %v1085, %v1133
  %v1135 = vpop.f32.mrf.mxu0
  %v1136 = vadd.f32 %v1087, %v1135
  %1137 = vmatmul.bf16.gmra.mxu0 %v717
  %v1138 = vpop.f32.mrf.mxu0
  %v1139 = vadd.f32 %v1090, %v1138
  %v1140 = vpop.f32.mrf.mxu0
  %v1141 = vadd.f32 %v1092, %v1140
  %1142 = vmatmul.bf16.gmra.mxu0 %v727
  %v1143 = vpop.f32.mrf.mxu0
  %v1144 = vadd.f32 %v1095, %v1143
  %v1145 = vpop.f32.mrf.mxu0
  %v1146 = vadd.f32 %v1097, %v1145
  %1147 = vmatmul.bf16.gmra.mxu0 %v737
  %v1148 = vpop.f32.mrf.mxu0
  %v1149 = vadd.f32 %v1100, %v1148
  %v1150 = vpop.f32.mrf.mxu0
  %v1151 = vadd.f32 %v1102, %v1150
  %1152 = vmatmul.bf16.gmra.mxu0 %v747
  %v1153 = vpop.f32.mrf.mxu0
  %v1154 = vadd.f32 %v1105, %v1153
  %v1155 = vpop.f32.mrf.mxu0
  %v1156 = vadd.f32 %v1107, %v1155
  %1157 = vmatmul.bf16.gmra.mxu0 %v757
  %v1158 = vpop.f32.mrf.mxu0
  %v1159 = vadd.f32 %v1110, %v1158
  %v1160 = vpop.f32.mrf.mxu0
  %v1161 = vadd.f32 %v1112, %v1160
  %1162 = vmatmul.bf16.gmra.mxu0 %v767
  %v1163 = vpop.f32.mrf.mxu0
  %v1164 = vadd.f32 %v1115, %v1163
  %v1165 = vpop.f32.mrf.mxu0
  %v1166 = vadd.f32 %v1117, %v1165
  %1167 = vmatmul.bf16.gmra.mxu0 %v777
  %v1168 = vpop.f32.mrf.mxu0
  %v1169 = vadd.f32 %v1120, %v1168
  %v1170 = vpop.f32.mrf.mxu0
  %v1171 = vadd.f32 %v1122, %v1170
  %1172 = vdwg.mxu0
  %1173 = vmatpush.bf16.msra.mxu0 %v363
  %1174 = vmatpush.bf16.msra.mxu0 %v362
  %1175 = vmatpush.bf16.msra.mxu0 %v361
  %1176 = vmatpush.bf16.msra.mxu0 %v360
  %1177 = vmatpush.bf16.msra.mxu0 %v359
  %1178 = vmatpush.bf16.msra.mxu0 %v358
  %1179 = vmatpush.bf16.msra.mxu0 %v357
  %1180 = vmatpush.bf16.msra.mxu0 %v356
  %1181 = vmatmul.bf16.gmra.mxu0 %v708
  %v1182 = vpop.f32.mrf.mxu0
  %v1183 = vadd.f32 %v1134, %v1182
  %v1184 = vpop.f32.mrf.mxu0
  %v1185 = vadd.f32 %v1136, %v1184
  %1186 = vmatmul.bf16.gmra.mxu0 %v718
  %v1187 = vpop.f32.mrf.mxu0
  %v1188 = vadd.f32 %v1139, %v1187
  %v1189 = vpop.f32.mrf.mxu0
  %v1190 = vadd.f32 %v1141, %v1189
  %1191 = vmatmul.bf16.gmra.mxu0 %v728
  %v1192 = vpop.f32.mrf.mxu0
  %v1193 = vadd.f32 %v1144, %v1192
  %v1194 = vpop.f32.mrf.mxu0
  %v1195 = vadd.f32 %v1146, %v1194
  %1196 = vmatmul.bf16.gmra.mxu0 %v738
  %v1197 = vpop.f32.mrf.mxu0
  %v1198 = vadd.f32 %v1149, %v1197
  %v1199 = vpop.f32.mrf.mxu0
  %v1200 = vadd.f32 %v1151, %v1199
  %1201 = vmatmul.bf16.gmra.mxu0 %v748
  %v1202 = vpop.f32.mrf.mxu0
  %v1203 = vadd.f32 %v1154, %v1202
  %v1204 = vpop.f32.mrf.mxu0
  %v1205 = vadd.f32 %v1156, %v1204
  %1206 = vmatmul.bf16.gmra.mxu0 %v758
  %v1207 = vpop.f32.mrf.mxu0
  %v1208 = vadd.f32 %v1159, %v1207
  %v1209 = vpop.f32.mrf.mxu0
  %v1210 = vadd.f32 %v1161, %v1209
  %1211 = vmatmul.bf16.gmra.mxu0 %v768
  %v1212 = vpop.f32.mrf.mxu0
  %v1213 = vadd.f32 %v1164, %v1212
  %v1214 = vpop.f32.mrf.mxu0
  %v1215 = vadd.f32 %v1166, %v1214
  %1216 = vmatmul.bf16.gmra.mxu0 %v778
  %v1217 = vpop.f32.mrf.mxu0
  %v1218 = vadd.f32 %v1169, %v1217
  %v1219 = vpop.f32.mrf.mxu0
  %v1220 = vadd.f32 %v1171, %v1219
  %1221 = vdwg.mxu0
  %1222 = vmatpush.bf16.msra.mxu0 %v371
  %1223 = vmatpush.bf16.msra.mxu0 %v370
  %1224 = vmatpush.bf16.msra.mxu0 %v369
  %1225 = vmatpush.bf16.msra.mxu0 %v368
  %1226 = vmatpush.bf16.msra.mxu0 %v367
  %1227 = vmatpush.bf16.msra.mxu0 %v366
  %1228 = vmatpush.bf16.msra.mxu0 %v365
  %1229 = vmatpush.bf16.msra.mxu0 %v364
  %1230 = vmatmul.bf16.gmra.mxu0 %v709
  %v1231 = vpop.f32.mrf.mxu0
  %v1232 = vadd.f32 %v1183, %v1231
  %v1233 = vpop.f32.mrf.mxu0
  %v1234 = vadd.f32 %v1185, %v1233
  %1235 = vmatmul.bf16.gmra.mxu0 %v719
  %v1236 = vpop.f32.mrf.mxu0
  %v1237 = vadd.f32 %v1188, %v1236
  %v1238 = vpop.f32.mrf.mxu0
  %v1239 = vadd.f32 %v1190, %v1238
  %1240 = vmatmul.bf16.gmra.mxu0 %v729
  %v1241 = vpop.f32.mrf.mxu0
  %v1242 = vadd.f32 %v1193, %v1241
  %v1243 = vpop.f32.mrf.mxu0
  %v1244 = vadd.f32 %v1195, %v1243
  %1245 = vmatmul.bf16.gmra.mxu0 %v739
  %v1246 = vpop.f32.mrf.mxu0
  %v1247 = vadd.f32 %v1198, %v1246
  %v1248 = vpop.f32.mrf.mxu0
  %v1249 = vadd.f32 %v1200, %v1248
  %1250 = vmatmul.bf16.gmra.mxu0 %v749
  %v1251 = vpop.f32.mrf.mxu0
  %v1252 = vadd.f32 %v1203, %v1251
  %v1253 = vpop.f32.mrf.mxu0
  %v1254 = vadd.f32 %v1205, %v1253
  %1255 = vmatmul.bf16.gmra.mxu0 %v759
  %v1256 = vpop.f32.mrf.mxu0
  %v1257 = vadd.f32 %v1208, %v1256
  %v1258 = vpop.f32.mrf.mxu0
  %v1259 = vadd.f32 %v1210, %v1258
  %1260 = vmatmul.bf16.gmra.mxu0 %v769
  %v1261 = vpop.f32.mrf.mxu0
  %v1262 = vadd.f32 %v1213, %v1261
  %v1263 = vpop.f32.mrf.mxu0
  %v1264 = vadd.f32 %v1215, %v1263
  %1265 = vmatmul.bf16.gmra.mxu0 %v779
  %v1266 = vpop.f32.mrf.mxu0
  %v1267 = vadd.f32 %v1218, %v1266
  %v1268 = vpop.f32.mrf.mxu0
  %v1269 = vadd.f32 %v1220, %v1268
  %1270 = vdwg.mxu0
  %1271 = vmatpush.bf16.msra.mxu0 %v379
  %1272 = vmatpush.bf16.msra.mxu0 %v378
  %1273 = vmatpush.bf16.msra.mxu0 %v377
  %1274 = vmatpush.bf16.msra.mxu0 %v376
  %1275 = vmatpush.bf16.msra.mxu0 %v375
  %1276 = vmatpush.bf16.msra.mxu0 %v374
  %1277 = vmatpush.bf16.msra.mxu0 %v373
  %1278 = vmatpush.bf16.msra.mxu0 %v372
  %1279 = vmatmul.bf16.gmra.mxu0 %v710
  %v1280 = vpop.f32.mrf.mxu0
  %v1281 = vadd.f32 %v1232, %v1280
  %v1282 = vpop.f32.mrf.mxu0
  %v1283 = vadd.f32 %v1234, %v1282
  %1284 = vmatmul.bf16.gmra.mxu0 %v720
  %v1285 = vpop.f32.mrf.mxu0
  %v1286 = vadd.f32 %v1237, %v1285
  %v1287 = vpop.f32.mrf.mxu0
  %v1288 = vadd.f32 %v1239, %v1287
  %1289 = vmatmul.bf16.gmra.mxu0 %v730
  %v1290 = vpop.f32.mrf.mxu0
  %v1291 = vadd.f32 %v1242, %v1290
  %v1292 = vpop.f32.mrf.mxu0
  %v1293 = vadd.f32 %v1244, %v1292
  %1294 = vmatmul.bf16.gmra.mxu0 %v740
  %v1295 = vpop.f32.mrf.mxu0
  %v1296 = vadd.f32 %v1247, %v1295
  %v1297 = vpop.f32.mrf.mxu0
  %v1298 = vadd.f32 %v1249, %v1297
  %1299 = vmatmul.bf16.gmra.mxu0 %v750
  %v1300 = vpop.f32.mrf.mxu0
  %v1301 = vadd.f32 %v1252, %v1300
  %v1302 = vpop.f32.mrf.mxu0
  %v1303 = vadd.f32 %v1254, %v1302
  %1304 = vmatmul.bf16.gmra.mxu0 %v760
  %v1305 = vpop.f32.mrf.mxu0
  %v1306 = vadd.f32 %v1257, %v1305
  %v1307 = vpop.f32.mrf.mxu0
  %v1308 = vadd.f32 %v1259, %v1307
  %1309 = vmatmul.bf16.gmra.mxu0 %v770
  %v1310 = vpop.f32.mrf.mxu0
  %v1311 = vadd.f32 %v1262, %v1310
  %v1312 = vpop.f32.mrf.mxu0
  %v1313 = vadd.f32 %v1264, %v1312
  %1314 = vmatmul.bf16.gmra.mxu0 %v780
  %v1315 = vpop.f32.mrf.mxu0
  %v1316 = vadd.f32 %v1267, %v1315
  %v1317 = vpop.f32.mrf.mxu0
  %v1318 = vadd.f32 %v1269, %v1317
  %1319 = vdwg.mxu0
  %1320 = vmatpush.bf16.msra.mxu0 0
  %1321 = vmatpush.bf16.msra.mxu0 0
  %1322 = vmatpush.bf16.msra.mxu0 0
  %1323 = vmatpush.bf16.msra.mxu0 0
  %1324 = vmatpush.bf16.msra.mxu0 0
  %1325 = vmatpush.bf16.msra.mxu0 0
  %1326 = vmatpush.bf16.msra.mxu0 %v381
  %1327 = vmatpush.bf16.msra.mxu0 %v380
  %1328 = vmatmul.bf16.gmra.mxu0 %v856
  %v1329 = vpop.f32.mrf.mxu0
  %v1330 = vadd.f32 %v1281, %v1329
  %v1331 = vpop.f32.mrf.mxu0
  %v1332 = vadd.f32 %v1283, %v1331
  %1333 = vmatmul.bf16.gmra.mxu0 %v859
  %v1334 = vpop.f32.mrf.mxu0
  %v1335 = vadd.f32 %v1286, %v1334
  %v1336 = vpop.f32.mrf.mxu0
  %v1337 = vadd.f32 %v1288, %v1336
  %1338 = vmatmul.bf16.gmra.mxu0 %v862
  %v1339 = vpop.f32.mrf.mxu0
  %v1340 = vadd.f32 %v1291, %v1339
  %v1341 = vpop.f32.mrf.mxu0
  %v1342 = vadd.f32 %v1293, %v1341
  %1343 = vmatmul.bf16.gmra.mxu0 %v865
  %v1344 = vpop.f32.mrf.mxu0
  %v1345 = vadd.f32 %v1296, %v1344
  %v1346 = vpop.f32.mrf.mxu0
  %v1347 = vadd.f32 %v1298, %v1346
  %1348 = vmatmul.bf16.gmra.mxu0 %v868
  %v1349 = vpop.f32.mrf.mxu0
  %v1350 = vadd.f32 %v1301, %v1349
  %v1351 = vpop.f32.mrf.mxu0
  %v1352 = vadd.f32 %v1303, %v1351
  %1353 = vmatmul.bf16.gmra.mxu0 %v871
  %v1354 = vpop.f32.mrf.mxu0
  %v1355 = vadd.f32 %v1306, %v1354
  %v1356 = vpop.f32.mrf.mxu0
  %v1357 = vadd.f32 %v1308, %v1356
  %1358 = vmatmul.bf16.gmra.mxu0 %v874
  %v1359 = vpop.f32.mrf.mxu0
  %v1360 = vadd.f32 %v1311, %v1359
  %v1361 = vpop.f32.mrf.mxu0
  %v1362 = vadd.f32 %v1313, %v1361
  %1363 = vmatmul.bf16.gmra.mxu0 %v877
  %v1364 = vpop.f32.mrf.mxu0
  %v1365 = vadd.f32 %v1316, %v1364
  %v1366 = vpop.f32.mrf.mxu0
  %v1367 = vadd.f32 %v1318, %v1366
  %1368 = vdwg.mxu0
  %vm1369 = vcmask 400384
  %1370 = vst.msk [vmem:[%s2] sm:$0xff] %vm1369, %v1330
  %1371 = vst.msk [vmem:[%s2 + $0x8] sm:$0xff] %vm1369, %v1332
  %1372 = vst.msk [vmem:[%s2 + $0x10] sm:$0xff] %vm1369, %v1335
  %1373 = vst.msk [vmem:[%s2 + $0x18] sm:$0xff] %vm1369, %v1337
  %1374 = vst.msk [vmem:[%s2 + $0x20] sm:$0xff] %vm1369, %v1340
  %1375 = vst.msk [vmem:[%s2 + $0x28] sm:$0xff] %vm1369, %v1342
  %1376 = vst.msk [vmem:[%s2 + $0x30] sm:$0xff] %vm1369, %v1345
  %1377 = vst.msk [vmem:[%s2 + $0x38] sm:$0xff] %vm1369, %v1347
  %1378 = vst.msk [vmem:[%s2 + $0x40] sm:$0xff] %vm1369, %v1350
  %1379 = vst.msk [vmem:[%s2 + $0x48] sm:$0xff] %vm1369, %v1352
  %1380 = vst.msk [vmem:[%s2 + $0x50] sm:$0xff] %vm1369, %v1355
  %1381 = vst.msk [vmem:[%s2 + $0x58] sm:$0xff] %vm1369, %v1357
  %1382 = vst.msk [vmem:[%s2 + $0x60] sm:$0xff] %vm1369, %v1360
  %1383 = vst.msk [vmem:[%s2 + $0x68] sm:$0xff] %vm1369, %v1362
  %1384 = vst.msk [vmem:[%s2 + $0x70] sm:$0xff] %vm1369, %v1365
  %1385 = vst.msk [vmem:[%s2 + $0x78] sm:$0xff] %vm1369, %v1367
  // Predicated region
  $region10: #{relu_conv2d_1x1.1} parent=0 // pred_check
    _
  $region11: #{relu_conv2d_1x1.1} parent=0 // pred_check_branch
    %1387 = sbr.rel (0) target = $region13
  $region12: #{relu_conv2d_1x1.1} parent=0 // pred_region
    _
  $region13: #{relu_conv2d_1x1.1} parent=0 // pred_fallthru
    _
  // Predicated region
  $region14: #{relu_conv2d_1x1.1} parent=0 // pred_check
    _
  $region15: #{relu_conv2d_1x1.1} parent=0 // pred_check_branch
    %1389 = sbr.rel (0) target = $region17
  $region16: #{relu_conv2d_1x1.1} parent=0 // pred_region
    _
  $region17: #{relu_conv2d_1x1.1} parent=0 // pred_fallthru
    _

</llo_original>
